<compile_context>
chip_gen: v6e
topology: v6e:2x2x1
jax: 0.10.0
libtpu: 0.0.40
codegen_flags: <defaults>
</compile_context>

<pallas_src>
import functools

import jax
import jax.numpy as jnp
from jax import lax
from jax.experimental import pallas as pl
from jax.experimental.pallas import tpu as pltpu


# --------------------------- kernel A: fused projection ---------------------------
def gat_project_kernel(feat_ref, w_ref, alblk_ref, arblk_ref,
                       ft_ref, elT_ref, er_ref):
    """ft = feat @ W for all heads (bf16 MXU inputs, f32 accumulation) plus the
    per-head attention logits:
        elT[h, n] = sum_o attn_l[h, o] * ft[n, h*out + o]   (src term, transposed)
        er [n, h] = sum_o attn_r[h, o] * ft[n, h*out + o]   (dst term)
    el / er are computed with two block-diagonal matmuls over all heads (no per-head
    M=1 matmuls, no XLU lane reductions)."""
    feat = feat_ref[...].astype(jnp.bfloat16)                              # (Tp, Fin)
    ft = jnp.dot(feat, w_ref[...], preferred_element_type=jnp.float32)     # (Tp, Hout)
    ftb = ft.astype(jnp.bfloat16)
    ft_ref[...] = ftb
    # (H, Hout) x (Tp, Hout)^T -> (H, Tp)
    elT_ref[...] = lax.dot_general(alblk_ref[...], ftb, (((1,), (1,)), ((), ())),
                                   preferred_element_type=jnp.float32)
    # (Tp, Hout) x (Hout, H) -> (Tp, H)
    er_ref[...] = jnp.dot(ftb, arblk_ref[...], preferred_element_type=jnp.float32)


# --------------------------- kernel B: tiled attention ---------------------------
def gat_attend_kernel(cnt_ref, elT_ref, er_ref, ft_ref, adj_ref, feat_ref, bias_ref,
                      out_ref, m_scr, l_scr, acc_scr, *,
                      num_heads, out_feats, num_src_steps,
                      negative_slope, residual, apply_tanh):
    """Flash-style online-softmax GAT aggregation over one (dst, src) tile."""
    d = pl.program_id(0)
    s = pl.program_id(1)

    @pl.when(s == 0)
    def _():
        m_scr[...] = jnp.full_like(m_scr, -jnp.inf)
        l_scr[...] = jnp.zeros_like(l_scr)
        acc_scr[...] = jnp.zeros_like(acc_scr)

    # Sparsity skip: tiles with zero edges contribute nothing to m/l/acc.
    @pl.when(cnt_ref[d * num_src_steps + s] > 0)
    def _():
        mask = adj_ref[...] != 0                       # (Tdst, Tsrc) int8 -> bool
        ft_src = ft_ref[...]                           # (Tsrc, Hout) bf16
        neg_big = jnp.float32(-1e30)
        slope = jnp.float32(negative_slope)
        for h in range(num_heads):                     # static unroll; H is tiny
            lo = h * out_feats
            el_row = elT_ref[h:h + 1, :]               # (1, Tsrc)  src term
            er_col = er_ref[:, h:h + 1]                # (Tdst, 1)  dst term
            # e[dst, src] = leaky_relu(el[src] + er[dst])
            e = er_col + el_row
            e = jnp.maximum(e, slope * e)              # LeakyReLU (0 < slope < 1)
            scores = jnp.where(mask, e, neg_big)
            m_prev = m_scr[:, h:h + 1]
            m_new = jnp.maximum(m_prev, jnp.max(scores, axis=1, keepdims=True))
            # Explicit masking after exp keeps fully-masked tile rows exactly zero.
            p = jnp.where(mask, jnp.exp(scores - m_new), 0.0)              # f32
            corr = jnp.exp(m_prev - m_new)                                 # (Tdst, 1)
            l_scr[:, h:h + 1] = corr * l_scr[:, h:h + 1] + jnp.sum(p, axis=1,
                                                                   keepdims=True)
            acc_scr[:, lo:lo + out_feats] = (
                corr * acc_scr[:, lo:lo + out_feats]
                + jnp.dot(p.astype(jnp.bfloat16), ft_src[:, lo:lo + out_feats],
                          preferred_element_type=jnp.float32))
            m_scr[:, h:h + 1] = m_new

    @pl.when(s == num_src_steps - 1)
    def _():
        bias = bias_ref[...]                           # (1, Hout)
        for h in range(num_heads):
            lo = h * out_feats
            denom = jnp.maximum(l_scr[:, h:h + 1], jnp.float32(1e-20))
            # Exact divide (validation path); TODO(synk): pl.reciprocal(approx=True)
            # in production builds.
            r = acc_scr[:, lo:lo + out_feats] / denom
            if residual:
                # DGL identity residual: in flatten(1) layout this is the matching
                # column slice of the layer input.
                r = r + feat_ref[:, lo:lo + out_feats]
            r = r + bias[:, lo:lo + out_feats]
            r = jnp.where(r > 0, r, jnp.exp(jnp.minimum(r, 0.0)) - 1.0)    # ELU
            if apply_tanh:                             # GATEmbedder's final tanh
                r = jnp.tanh(r)
            out_ref[:, lo:lo + out_feats] = r          # head slab, no concatenate


# ------------------------------- wrappers -------------------------------
def _largest_tile(n, cap, mult):
    """Largest divisor of n that is <= cap and a multiple of `mult`; n itself if
    n <= cap (a full-extent block is always legal)."""
    if n <= cap:
        return n
    for t in range(cap - cap % mult, 0, -mult):
        if n % t == 0:
            return t
    return n


def gat_layer_pallas(feat, W, attn_l, attn_r, adj_i8, bias, *,
                     negative_slope, residual, apply_tanh):
    """One GATConv layer (DGL semantics, eval mode).
    feat (N,Fin); W (H,Fin,out); attn_l/attn_r/bias (H,1,out); adj (N,N) int8.
    Returns (N, H*out) float32 in .flatten(1) head-major layout."""
    H, Fin, dout = W.shape
    N = feat.shape[0]
    Hout = H * dout
    if residual:
        assert Fin == Hout, "identity residual requires in_feats == heads*out_feats"

    # ---- host-side one-time parameter packing ----
    feat = feat.astype(jnp.float32)
    w_fused = jnp.transpose(W, (1, 0, 2)).reshape(Fin, Hout).astype(jnp.bfloat16)
    al = attn_l.reshape(H, dout).astype(jnp.bfloat16)
    ar = attn_r.reshape(H, dout).astype(jnp.bfloat16)
    eye = jnp.eye(H, dtype=jnp.bfloat16)
    alblk = (eye[:, :, None] * al[None, :, :]).reshape(H, Hout)      # block-diag (H, Hout)
    arblk = (ar[:, :, None] * eye[:, None, :]).reshape(Hout, H)      # block-diag (Hout, H)
    bias_row = bias.reshape(1, Hout).astype(jnp.float32)

    # ---- tile sizes (sized so the (Tdst,Tsrc) f32 score tile + double-buffered int8
    #      adjacency stay well under v7x's 64 MiB VMEM; v5e/v6e have more headroom) ----
    t_proj = _largest_tile(N, 512, 8)
    t_dst = _largest_tile(N, 256, 8)
    t_src = _largest_tile(N, 512, 128)
    n_dst, n_src = N // t_dst, N // t_src

    # ---- kernel A: projection + attention logits (computed once per layer) ----
    ft_b16, elT, er = pl.pallas_call(
        gat_project_kernel,
        out_shape=(jax.ShapeDtypeStruct((N, Hout), jnp.bfloat16),
                   jax.ShapeDtypeStruct((H, N), jnp.float32),
                   jax.ShapeDtypeStruct((N, H), jnp.float32)),
        grid=(N // t_proj,),
        in_specs=[pl.BlockSpec((t_proj, Fin), lambda i: (i, 0)),
                  pl.BlockSpec((Fin, Hout), lambda i: (0, 0)),
                  pl.BlockSpec((H, Hout), lambda i: (0, 0)),
                  pl.BlockSpec((Hout, H), lambda i: (0, 0))],
        out_specs=(pl.BlockSpec((t_proj, Hout), lambda i: (i, 0)),
                   pl.BlockSpec((H, t_proj), lambda i: (0, i)),
                   pl.BlockSpec((t_proj, H), lambda i: (i, 0))),
        compiler_params=pltpu.CompilerParams(dimension_semantics=("parallel",)),
    )(feat, w_fused, alblk, arblk)

    # ---- per-(dst,src)-tile edge counts for the sparsity skip (scalar prefetch) ----
    tile_cnt = (adj_i8.astype(jnp.int32)
                .reshape(n_dst, t_dst, n_src, t_src)
                .sum(axis=(1, 3))
                .reshape(n_dst * n_src))

    kernel = functools.partial(
        gat_attend_kernel, num_heads=H, out_feats=dout, num_src_steps=n_src,
        negative_slope=negative_slope, residual=residual, apply_tanh=apply_tanh)

    grid_spec = pltpu.PrefetchScalarGridSpec(
        num_scalar_prefetch=1,
        grid=(n_dst, n_src),
        in_specs=[
            pl.BlockSpec((H, t_src), lambda d, s, cnt: (0, s)),      # el^T (src term)
            pl.BlockSpec((t_dst, H), lambda d, s, cnt: (d, 0)),      # er (dst term)
            pl.BlockSpec((t_src, Hout), lambda d, s, cnt: (s, 0)),   # projected src feats
            pl.BlockSpec((t_dst, t_src), lambda d, s, cnt: (d, s)),  # adjacency (int8)
            pl.BlockSpec((t_dst, Fin), lambda d, s, cnt: (d, 0)),    # layer input (residual)
            pl.BlockSpec((1, Hout), lambda d, s, cnt: (0, 0)),       # bias
        ],
        out_specs=pl.BlockSpec((t_dst, Hout), lambda d, s, cnt: (d, 0)),
        scratch_shapes=[pltpu.VMEM((t_dst, H), jnp.float32),      # running max  m
                        pltpu.VMEM((t_dst, H), jnp.float32),      # running sum  l
                        pltpu.VMEM((t_dst, Hout), jnp.float32)])  # running acc

    return pl.pallas_call(
        kernel,
        out_shape=jax.ShapeDtypeStruct((N, Hout), jnp.float32),
        grid_spec=grid_spec,
        compiler_params=pltpu.CompilerParams(
            dimension_semantics=("parallel", "arbitrary")),
    )(tile_cnt, elT, er, ft_b16, adj_i8, feat, bias_row)


def gat_embedder_forward(feat, params, adj_i8, negative_slope):
    """GATEmbedder.forward: stacked GATConv layers, flatten(1) each, final tanh."""
    h = feat.astype(jnp.float32)
    num_layers = len(params)
    for l, (W, al, ar, bias, residual) in enumerate(params):
        h = gat_layer_pallas(h, W, al, ar, adj_i8, bias,
                             negative_slope=negative_slope,
                             residual=residual,
                             apply_tanh=(l == num_layers - 1))
    return h


def gat_encoder_forward(ids, id2node, h):
    """GATEncoder.forward: gather embedding rows for mapped ids, zeros otherwise."""
    # Dict lookup happens on host (same as .item() + python dict in torch).
    nodes = jnp.array([id2node.get(int(i), 0) for i in ids], dtype=jnp.int32)
    valid = jnp.array([1.0 if int(i) in id2node else 0.0 for i in ids],
                      dtype=jnp.float32)
    return h[nodes] * valid[:, None]


# ------------------------- pure-JAX reference (sanity) -------------------------
# Mirrors the kernel's precision choices (bf16 MXU inputs, f32 accumulation,
# f32 softmax, exact divide) so the check isolates algorithmic errors.
def _gat_layer_ref(feat, W, attn_l, attn_r, adj, bias, residual, slope, apply_tanh):
    H, Fin, dout = W.shape
    N = feat.shape[0]
    Hout = H * dout
    wf = jnp.transpose(W, (1, 0, 2)).reshape(Fin, Hout).astype(jnp.bfloat16)
    ft = jnp.dot(feat.astype(jnp.bfloat16), wf, preferred_element_type=jnp.float32)
    ftb = ft.astype(jnp.bfloat16)
    ft3 = ftb.astype(jnp.float32).reshape(N, H, dout)
    al = attn_l.reshape(H, dout).astype(jnp.bfloat16).astype(jnp.float32)
    ar = attn_r.reshape(H, dout).astype(jnp.bfloat16).astype(jnp.float32)
    el = jnp.einsum('nho,ho->hn', ft3, al)               # (H, N) src term
    er = jnp.einsum('nho,ho->nh', ft3, ar)               # (N, H) dst term
    bias_row = bias.reshape(1, Hout).astype(jnp.float32)
    outs = []
    for h in range(H):
        lo = h * dout
        e = er[:, h:h + 1] + el[h][None, :]              # (N_dst, N_src)
        e = jnp.maximum(e, slope * e)
        scores = jnp.where(adj > 0, e, -1e30)
        m = scores.max(axis=1, keepdims=True)
        p = jnp.where(adj > 0, jnp.exp(scores - m), 0.0)
        denom = jnp.maximum(p.sum(axis=1, keepdims=True), 1e-20)
        agg = jnp.dot(p.astype(jnp.bfloat16), ftb[:, lo:lo + dout],
                      preferred_element_type=jnp.float32)
        r = agg / denom
        if residual:
            r = r + feat[:, lo:lo + dout]
        r = r + bias_row[:, lo:lo + dout]
        r = jnp.where(r > 0, r, jnp.exp(jnp.minimum(r, 0.0)) - 1.0)
        if apply_tanh:
            r = jnp.tanh(r)
        outs.append(r)
    return jnp.concatenate(outs, axis=1)


def _embedder_ref(feat, params, adj, slope):
    h = feat.astype(jnp.float32)
    L = len(params)
    for l, (W, al, ar, bias, residual) in enumerate(params):
        h = _gat_layer_ref(h, W, al, ar, adj, bias, residual, slope, l == L - 1)
    return h


if __name__ == "__main__":
    # small synthetic config: args.img_infeat=32, num_hidden=16, num_heads=2, num_layers=2
    N, in_dim, hid, H, L = 16, 32, 16, 2, 2
    negative_slope = 0.2

    key = jax.random.PRNGKey(0)
    keys = jax.random.split(key, 8)

    # graph.ndata['feat'] and graph structure (dense adjacency, self-loops added)
    features = jax.random.normal(keys[0], (N, in_dim), jnp.float32)
    adj = (jax.random.uniform(keys[1], (N, N)) < 0.3).astype(jnp.float32)
    adj = jnp.maximum(adj, jnp.eye(N, dtype=jnp.float32))   # dgl.add_self_loop
    adj_i8 = adj.astype(jnp.int8)                           # compact mask for the kernel

    # deterministic GATConv parameters (fc.weight, attn_l, attn_r, bias)
    params = []
    fin = in_dim
    for l in range(L):
        kw, kl, kr, kb = jax.random.split(keys[2 + l], 4)
        W = jax.random.normal(kw, (H, fin, hid), jnp.float32) * 0.1
        al = jax.random.normal(kl, (H, 1, hid), jnp.float32) * 0.1
        ar = jax.random.normal(kr, (H, 1, hid), jnp.float32) * 0.1
        b = jax.random.normal(kb, (H, 1, hid), jnp.float32) * 0.01
        params.append((W, al, ar, b, l > 0))                 # residual=False for layer 0
        fin = H * hid

    # h = self.gat(self.graph, self.features)   (hot path: Pallas GAT layers)
    h = gat_embedder_forward(features, params, adj_i8, negative_slope)

    # synthetic id2node map (replaces idx2node.csv)
    id2node = {0: 3, 2: 7, 5: 11, 7: 0}
    ids = [0, 1, 2, 5, 9, 7]
    out = gat_encoder_forward(ids, id2node, h)
    out = jax.block_until_ready(out)

    # sanity check against the pure-JAX reference (same bf16-MXU precision choices,
    # exact reciprocal -> remaining diff is accumulation order only)
    h_ref = _embedder_ref(features, params, adj, negative_slope)
    assert out.shape == (len(ids), H * hid)
    assert jnp.allclose(h, h_ref, atol=5e-3, rtol=5e-3), "kernel mismatch vs reference"

    print("KERNEL_OK")
</pallas_src>

<mosaic_0001>
module attributes {stable_mosaic.version = 11 : i64} {
  func.func @gat_project_kernel(%arg0: i32, %arg1: memref<16x32xf32, #tpu.memory_space<vmem>>, %arg2: memref<32x32xbf16, #tpu.memory_space<vmem>>, %arg3: memref<2x32xbf16, #tpu.memory_space<vmem>>, %arg4: memref<32x2xbf16, #tpu.memory_space<vmem>>, %arg5: memref<16x32xbf16, #tpu.memory_space<vmem>>, %arg6: memref<2x16xf32, #tpu.memory_space<vmem>>, %arg7: memref<16x2xf32, #tpu.memory_space<vmem>>) attributes {dimension_semantics = [#tpu.dimension_semantics<parallel>], iteration_bounds = array<i64: 1>, scalar_prefetch = 0 : i64, scratch_operands = 0 : i64, tpu.core_type = #tpu.core_type<tc>, window_params = [{transform_indices = @transform_0, window_bounds = array<i64: 16, 32>}, {pipeline_mode = #tpu.pipeline_mode<synchronous>, transform_indices = @transform_1, window_bounds = array<i64: 32, 32>}, {pipeline_mode = #tpu.pipeline_mode<synchronous>, transform_indices = @transform_2, window_bounds = array<i64: 2, 32>}, {pipeline_mode = #tpu.pipeline_mode<synchronous>, transform_indices = @transform_3, window_bounds = array<i64: 32, 2>}, {transform_indices = @transform_4, window_bounds = array<i64: 16, 32>}, {transform_indices = @transform_5, window_bounds = array<i64: 2, 16>}, {transform_indices = @transform_6, window_bounds = array<i64: 16, 2>}]} {
    %c0 = arith.constant 0 : index
    %c0_0 = arith.constant 0 : index
    %0 = vector.load %arg1[%c0, %c0_0] : memref<16x32xf32, #tpu.memory_space<vmem>>, vector<16x32xf32>
    %1 = arith.truncf %0 : vector<16x32xf32> to vector<16x32xbf16>
    %c0_1 = arith.constant 0 : index
    %c0_2 = arith.constant 0 : index
    %2 = vector.load %arg2[%c0_1, %c0_2] : memref<32x32xbf16, #tpu.memory_space<vmem>>, vector<32x32xbf16>
    %cst = arith.constant dense<0.000000e+00> : vector<16x32xf32>
    %3 = tpu.matmul %1, %2, %cst {dimension_numbers = #tpu.dot_dimension_numbers<[1], [0], [0], [1], [0, 0, 1, 1], [], []>} : vector<16x32xbf16>, vector<32x32xbf16>, vector<16x32xf32> -> vector<16x32xf32>
    %4 = arith.truncf %3 : vector<16x32xf32> to vector<16x32xbf16>
    %c0_3 = arith.constant 0 : index
    %c0_4 = arith.constant 0 : index
    %5 = vector.load %arg5[%c0_3, %c0_4] : memref<16x32xbf16, #tpu.memory_space<vmem>>, vector<16x32xbf16>
    tpu.vector_store %arg5[%c0_3, %c0_4], %4 {strides = array<i32>} : memref<16x32xbf16, #tpu.memory_space<vmem>>, vector<16x32xbf16>,
    %c0_5 = arith.constant 0 : index
    %c0_6 = arith.constant 0 : index
    %6 = vector.load %arg3[%c0_5, %c0_6] : memref<2x32xbf16, #tpu.memory_space<vmem>>, vector<2x32xbf16>
    %cst_7 = arith.constant dense<0.000000e+00> : vector<2x16xf32>
    %7 = tpu.matmul %6, %4, %cst_7 {dimension_numbers = #tpu.dot_dimension_numbers<[1], [1], [0], [0], [0, 0, 1, 0], [], []>} : vector<2x32xbf16>, vector<16x32xbf16>, vector<2x16xf32> -> vector<2x16xf32>
    %c0_8 = arith.constant 0 : index
    %c0_9 = arith.constant 0 : index
    %8 = vector.load %arg6[%c0_8, %c0_9] : memref<2x16xf32, #tpu.memory_space<vmem>>, vector<2x16xf32>
    tpu.vector_store %arg6[%c0_8, %c0_9], %7 {strides = array<i32>} : memref<2x16xf32, #tpu.memory_space<vmem>>, vector<2x16xf32>,
    %c0_10 = arith.constant 0 : index
    %c0_11 = arith.constant 0 : index
    %9 = vector.load %arg4[%c0_10, %c0_11] : memref<32x2xbf16, #tpu.memory_space<vmem>>, vector<32x2xbf16>
    %cst_12 = arith.constant dense<0.000000e+00> : vector<16x2xf32>
    %10 = tpu.matmul %4, %9, %cst_12 {dimension_numbers = #tpu.dot_dimension_numbers<[1], [0], [0], [1], [0, 0, 1, 1], [], []>} : vector<16x32xbf16>, vector<32x2xbf16>, vector<16x2xf32> -> vector<16x2xf32>
    %c0_13 = arith.constant 0 : index
    %c0_14 = arith.constant 0 : index
    %11 = vector.load %arg7[%c0_13, %c0_14] : memref<16x2xf32, #tpu.memory_space<vmem>>, vector<16x2xf32>
    tpu.vector_store %arg7[%c0_13, %c0_14], %10 {strides = array<i32>} : memref<16x2xf32, #tpu.memory_space<vmem>>, vector<16x2xf32>,
    return
  }
  func.func @transform_0(%arg0: i32) -> (i32, i32) {
    %c0_i32 = arith.constant 0 : i32
    %c0_i32_0 = arith.constant 0 : i32
    return %arg0, %c0_i32 : i32, i32
  }
  func.func @transform_1(%arg0: i32) -> (i32, i32) {
    %c0_i32 = arith.constant 0 : i32
    %c0_i32_0 = arith.constant 0 : i32
    %c0_i32_1 = arith.constant 0 : i32
    return %c0_i32, %c0_i32_0 : i32, i32
  }
  func.func @transform_2(%arg0: i32) -> (i32, i32) {
    %c0_i32 = arith.constant 0 : i32
    %c0_i32_0 = arith.constant 0 : i32
    %c0_i32_1 = arith.constant 0 : i32
    return %c0_i32, %c0_i32_0 : i32, i32
  }
  func.func @transform_3(%arg0: i32) -> (i32, i32) {
    %c0_i32 = arith.constant 0 : i32
    %c0_i32_0 = arith.constant 0 : i32
    %c0_i32_1 = arith.constant 0 : i32
    return %c0_i32, %c0_i32_0 : i32, i32
  }
  func.func @transform_4(%arg0: i32) -> (i32, i32) {
    %c0_i32 = arith.constant 0 : i32
    %c0_i32_0 = arith.constant 0 : i32
    return %arg0, %c0_i32 : i32, i32
  }
  func.func @transform_5(%arg0: i32) -> (i32, i32) {
    %c0_i32 = arith.constant 0 : i32
    %c0_i32_0 = arith.constant 0 : i32
    return %c0_i32, %arg0 : i32, i32
  }
  func.func @transform_6(%arg0: i32) -> (i32, i32) {
    %c0_i32 = arith.constant 0 : i32
    %c0_i32_0 = arith.constant 0 : i32
    return %arg0, %c0_i32 : i32, i32
  }
}

</mosaic_0001>

<llo_original>
// kernel: tpu_custom_call.1
$region0: #{tpu_custom_call.1}
  #allocation0 [shape = 'u32[]', space=smem, size = 0x4, offset = 0x4, fixed_abs, tag = 'smem constant byte address 0x4 - core index']
  #allocation1 [shape = 'u32[144,128]{1,0:T(1,128)}', space=vmem, size = 0x12000, scoped, tag = 'internal scratch']
  %s0 = inlined_call_operand.vmem [shape: f32[16,32], index: 0, kind: input, shape index: {}]
  %s1 = inlined_call_operand.hbm [shape: bf16[32,32], index: 1, kind: input, shape index: {}]
  %s2 = inlined_call_operand.vmem [shape: bf16[2,32], index: 2, kind: input, shape index: {}]
  %s3 = inlined_call_operand.vmem [shape: bf16[32,2], index: 3, kind: input, shape index: {}]
  %s4 = inlined_call_operand.hbm [shape: bf16[16,32], index: 4, kind: output, shape index: {0}]
  %s5 = inlined_call_operand.hbm [shape: f32[2,16], index: 5, kind: output, shape index: {1}]
  %s6 = inlined_call_operand.vmem [shape: f32[16,2], index: 6, kind: output, shape index: {2}]
  %7 = xla_tuple %s4, %s5, %s6
  %s8 = sld [smem:[#allocation0]]
  $region46: #{tpu_custom_call.1} parent=0
    _
  %s10 = ssub.s32 1, %s8
  %s11 = scalar_select 0, %s10, %s8
  $region1: #{tpu_custom_call.1} parent=0
    #allocation2 [shape = 'u8[8192]{0}', space=vmem, size = 0x2000, scoped, tag = 'input window, operand 1, single buffered']
    #allocation3 [shape = 's32[1]{0}', space=sflag, size = 0x4, scoped, tag = 'scoped memory for tpu_custom_call.1']
    #allocation4 [shape = 's32[1]{0}', space=sflag, size = 0x4, scoped, tag = 'scoped memory for tpu_custom_call.1']
    #allocation5 [shape = 'u8[4096]{0}', space=vmem, size = 0x1000, scoped, tag = 'output window, operand 0, single buffered']
    #allocation6 [shape = 'u8[1024]{0}', space=vmem, size = 0x400, scoped, tag = 'output window, operand 1, single buffered']
    #allocation7 [shape = 's32[1]{0}', space=sflag, size = 0x4, scoped, tag = 'scoped memory for tpu_custom_call.1']
    %12 = vsyncpa [#allocation3], 0
    %13 = vsyncpa [#allocation4], 0
    %14 = vsyncpa [#allocation7], 0
    // Predicated region
    $region2: #{tpu_custom_call.1} parent=1 // pred_check
      _
    $region3: #{tpu_custom_call.1} parent=1 // pred_check_branch
      %16 = sbr.rel (0) target = $region5
    $region4: #{tpu_custom_call.1} parent=1 // pred_region
      _
    $region5: #{tpu_custom_call.1} parent=1 // pred_fallthru
      _
    // Predicated region
    $region6: #{tpu_custom_call.1} parent=1 // pred_check
      _
    $region7: #{tpu_custom_call.1} parent=1 // pred_check_branch
      %18 = sbr.rel (0) target = $region9
    $region8: #{tpu_custom_call.1} parent=1 // pred_region
      %s20 = ssub.s32 256, 256
      %21 = vsyncadd [#allocation3], %s20
      %s22 = sshll.u32 [#allocation2], 4
      %s23 = int_to_ptr.vmem [resolvable:$true] %s22
      %28 = dma.hbm_to_vmem [thread:$0]  %s1, 256, %s23, [#allocation3], 64, 64, 4
    $region9: #{tpu_custom_call.1} parent=1 // pred_fallthru
      _
    // Predicated region
    $region10: #{tpu_custom_call.1} parent=1 // pred_check
      _
    $region11: #{tpu_custom_call.1} parent=1 // pred_check_branch
      %30 = sbr.rel (0) target = $region13
    $region12: #{tpu_custom_call.1} parent=1 // pred_region
      _
    $region13: #{tpu_custom_call.1} parent=1 // pred_fallthru
      _
    // Predicated region
    $region14: #{tpu_custom_call.1} parent=1 // pred_check
      _
    $region15: #{tpu_custom_call.1} parent=1 // pred_check_branch
      %32 = sbr.rel (0) target = $region17
    $region16: #{tpu_custom_call.1} parent=1 // pred_region
      _
    $region17: #{tpu_custom_call.1} parent=1 // pred_fallthru
      _
    // Predicated region
    $region18: #{tpu_custom_call.1} parent=1 // pred_check
      _
    $region19: #{tpu_custom_call.1} parent=1 // pred_check_branch
      %34 = sbr.rel (0) target = $region21
    $region20: #{tpu_custom_call.1} parent=1 // pred_region
      %35 = dma.done [#allocation3], 256
    $region21: #{tpu_custom_call.1} parent=1 // pred_fallthru
      _
    %v37 = vld [vmem:[%s0] sm:$0xff]
    %v38 = vld [vmem:[%s0 + $0x8] sm:$0xff]
    %v39 = vpack.c.bf16 %v38, %v37
    %v40 = vld [vmem:[#allocation2] sm:$0xf]
    %v41 = vld [vmem:[#allocation2 + $0x4] sm:$0xf]
    %v42 = vld [vmem:[#allocation2 + $0x8] sm:$0xf]
    %v43 = vld [vmem:[#allocation2 + $0xc] sm:$0xf]
    %v48 = vunpack.c.l.b16 %v40
    %v49 = vunpack.c.l.b16 %v41
    %v50 = vunpack.c.l.b16 %v42
    %v51 = vunpack.c.l.b16 %v43
    %v52 = vpack.c.b16 %v49, %v48
    %v53 = vpack.c.b16 %v51, %v50
    %vm56 = vcmask 261120
    %v58 = vsel %vm56, %v39, 0
    %60 = vmatprep.subr.bf16.mxu0 0
    %61 = vmatpush1.bf16.msra.mxu0 0
    %62 = vmatprep.subr.bf16.mxu0 0
    %63 = vmatpush1.bf16.msra.mxu0 0
    %64 = vmatprep.subr.bf16.mxu0 0
    %65 = vmatpush1.bf16.msra.mxu0 0
    %66 = vmatprep.subr.bf16.mxu0 0
    %67 = vmatpush1.bf16.msra.mxu0 0
    %68 = vmatprep.subr.bf16.mxu0 0
    %69 = vmatpush1.bf16.msra.mxu0 0
    %70 = vmatprep.subr.bf16.mxu0 0
    %71 = vmatpush1.bf16.msra.mxu0 0
    %72 = vmatprep.subr.bf16.mxu0 0
    %73 = vmatpush1.bf16.msra.mxu0 %v53
    %74 = vmatprep.subr.bf16.mxu0 0
    %75 = vmatpush1.bf16.msra.mxu0 %v52
    %76 = vmatprep.subr.bf16.mxu0 0
    %77 = vmatpush2.bf16.msra.mxu0 0
    %78 = vmatprep.subr.bf16.mxu0 0
    %79 = vmatpush2.bf16.msra.mxu0 0
    %80 = vmatprep.subr.bf16.mxu0 0
    %81 = vmatpush2.bf16.msra.mxu0 0
    %82 = vmatprep.subr.bf16.mxu0 0
    %83 = vmatpush2.bf16.msra.mxu0 0
    %84 = vmatprep.subr.bf16.mxu0 0
    %85 = vmatpush2.bf16.msra.mxu0 0
    %86 = vmatprep.subr.bf16.mxu0 0
    %87 = vmatpush2.bf16.msra.mxu0 0
    %88 = vmatprep.subr.bf16.mxu0 0
    %89 = vmatpush2.bf16.msra.mxu0 0
    %90 = vmatprep.subr.bf16.mxu0 0
    %91 = vmatpush2.bf16.msra.mxu0 0
    %92 = vmatprep.mubr.bf16.mxu0 0
    %93 = vmatmul.mubr.bf16.gmra.mxu0 %v58
    %v94 = vpop.f32.mrf.mxu0
    %v95 = vadd.f32 0.0, %v94
    %v96 = vpop.f32.mrf.mxu0
    %v97 = vpop.f32.mrf.mxu0
    %v98 = vadd.f32 0.0, %v97
    %v99 = vpop.f32.mrf.mxu0
    %100 = vdwg.mxu0
    %v101 = vpack.c.bf16 %v98, %v95
    %v103 = vunpack.c.l.b16 %v101
    %v104 = vunpack.c.h.b16 %v101
    %v105 = vpack.c.b16 %v103, %v103
    %v106 = vpack.c.b16 %v104, %v104
    %vm109 = vcmask 257024
    %110 = vst.msk [vmem:[#allocation5] sm:$0xf] %vm109, %v105
    %111 = vst.msk [vmem:[#allocation5 + $0x4] sm:$0xf] %vm109, %v106
    %v112 = vld [vmem:[%s2] sm:$0x1]
    %v114 = vsel %vm56, %v112, 0
    %v117 = vsel %vm56, %v101, 0
    %119 = vmatprep.subr.bf16.mxu0 0
    %120 = vmatpush1.bf16.xpose.msra.mxu0 0
    %121 = vmatprep.subr.bf16.mxu0 0
    %122 = vmatpush1.bf16.xpose.msra.mxu0 0
    %123 = vmatprep.subr.bf16.mxu0 0
    %124 = vmatpush1.bf16.xpose.msra.mxu0 0
    %125 = vmatprep.subr.bf16.mxu0 0
    %126 = vmatpush1.bf16.xpose.msra.mxu0 0
    %127 = vmatprep.subr.bf16.mxu0 0
    %128 = vmatpush1.bf16.xpose.msra.mxu0 0
    %129 = vmatprep.subr.bf16.mxu0 0
    %130 = vmatpush1.bf16.xpose.msra.mxu0 0
    %131 = vmatprep.subr.bf16.mxu0 0
    %132 = vmatpush1.bf16.xpose.msra.mxu0 0
    %133 = vmatprep.subr.bf16.mxu0 0
    %134 = vmatpush1.bf16.xpose.msra.mxu0 %v117
    %135 = vmatprep.subr.bf16.mxu0 0
    %136 = vmatpush2.bf16.xpose.msra.mxu0 0
    %137 = vmatprep.subr.bf16.mxu0 0
    %138 = vmatpush2.bf16.xpose.msra.mxu0 0
    %139 = vmatprep.subr.bf16.mxu0 0
    %140 = vmatpush2.bf16.xpose.msra.mxu0 0
    %141 = vmatprep.subr.bf16.mxu0 0
    %142 = vmatpush2.bf16.xpose.msra.mxu0 0
    %143 = vmatprep.subr.bf16.mxu0 0
    %144 = vmatpush2.bf16.xpose.msra.mxu0 0
    %145 = vmatprep.subr.bf16.mxu0 0
    %146 = vmatpush2.bf16.xpose.msra.mxu0 0
    %147 = vmatprep.subr.bf16.mxu0 0
    %148 = vmatpush2.bf16.xpose.msra.mxu0 0
    %149 = vmatprep.subr.bf16.mxu0 0
    %150 = vmatpush2.bf16.xpose.msra.mxu0 0
    %151 = vmatprep.mubr.bf16.mxu0 0
    %152 = vmatmul.mubr.bf16.gmra.mxu0 %v114
    %v153 = vpop.f32.mrf.mxu0
    %v154 = vadd.f32 0.0, %v153
    %v155 = vpop.f32.mrf.mxu0
    %v156 = vpop.f32.mrf.mxu0
    %v157 = vpop.f32.mrf.mxu0
    %158 = vdwg.mxu0
    %vm159 = vcmask 123904
    %160 = vst.msk [vmem:[#allocation6] sm:$0x3] %vm159, %v154
    %v161 = vld [vmem:[%s3] sm:$0xf]
    %v162 = vld [vmem:[%s3 + $0x4] sm:$0xf]
    %v163 = vld [vmem:[%s3 + $0x8] sm:$0xf]
    %v164 = vld [vmem:[%s3 + $0xc] sm:$0xf]
    %v169 = vunpack.c.l.b16 %v161
    %v170 = vunpack.c.l.b16 %v162
    %v171 = vunpack.c.l.b16 %v163
    %v172 = vunpack.c.l.b16 %v164
    %v173 = vpack.c.b16 %v170, %v169
    %v174 = vpack.c.b16 %v172, %v171
    %177 = vmatprep.subr.bf16.mxu0 0
    %178 = vmatpush1.bf16.msra.mxu0 0
    %179 = vmatprep.subr.bf16.mxu0 0
    %180 = vmatpush1.bf16.msra.mxu0 0
    %181 = vmatprep.subr.bf16.mxu0 0
    %182 = vmatpush1.bf16.msra.mxu0 0
    %183 = vmatprep.subr.bf16.mxu0 0
    %184 = vmatpush1.bf16.msra.mxu0 0
    %185 = vmatprep.subr.bf16.mxu0 0
    %186 = vmatpush1.bf16.msra.mxu0 0
    %187 = vmatprep.subr.bf16.mxu0 0
    %188 = vmatpush1.bf16.msra.mxu0 0
    %189 = vmatprep.subr.bf16.mxu0 0
    %190 = vmatpush1.bf16.msra.mxu0 %v174
    %191 = vmatprep.subr.bf16.mxu0 0
    %192 = vmatpush1.bf16.msra.mxu0 %v173
    %193 = vmatprep.subr.bf16.mxu0 0
    %194 = vmatpush2.bf16.msra.mxu0 0
    %195 = vmatprep.subr.bf16.mxu0 0
    %196 = vmatpush2.bf16.msra.mxu0 0
    %197 = vmatprep.subr.bf16.mxu0 0
    %198 = vmatpush2.bf16.msra.mxu0 0
    %199 = vmatprep.subr.bf16.mxu0 0
    %200 = vmatpush2.bf16.msra.mxu0 0
    %201 = vmatprep.subr.bf16.mxu0 0
    %202 = vmatpush2.bf16.msra.mxu0 0
    %203 = vmatprep.subr.bf16.mxu0 0
    %204 = vmatpush2.bf16.msra.mxu0 0
    %205 = vmatprep.subr.bf16.mxu0 0
    %206 = vmatpush2.bf16.msra.mxu0 0
    %207 = vmatprep.subr.bf16.mxu0 0
    %208 = vmatpush2.bf16.msra.mxu0 0
    %209 = vmatprep.mubr.bf16.mxu0 0
    %210 = vmatmul.mubr.bf16.gmra.mxu0 %v117
    %v211 = vpop.f32.mrf.mxu0
    %v212 = vadd.f32 0.0, %v211
    %v213 = vpop.f32.mrf.mxu0
    %v214 = vpop.f32.mrf.mxu0
    %v215 = vadd.f32 0.0, %v214
    %v216 = vpop.f32.mrf.mxu0
    %217 = vdwg.mxu0
    %vm218 = vcmask 15360
    %219 = vst.msk [vmem:[%s6] sm:$0xff] %vm218, %v212
    %220 = vst.msk [vmem:[%s6 + $0x8] sm:$0xff] %vm218, %v215
    // Predicated region
    $region22: #{tpu_custom_call.1} parent=1 // pred_check
      _
    $region23: #{tpu_custom_call.1} parent=1 // pred_check_branch
      %222 = sbr.rel (0) target = $region25
    $region24: #{tpu_custom_call.1} parent=1 // pred_region
      %s224 = ssub.s32 128, 128
      %225 = vsyncadd [#allocation4], %s224
      %s226 = sshll.u32 [#allocation5], 4
      %s227 = int_to_ptr.vmem [resolvable:$true] %s226
      %232 = dma.vmem_to_hbm [thread:$0]  %s227, 128, %s4, [#allocation4], 64, 64, 4
    $region25: #{tpu_custom_call.1} parent=1 // pred_fallthru
      _
    // Predicated region
    $region26: #{tpu_custom_call.1} parent=1 // pred_check
      _
    $region27: #{tpu_custom_call.1} parent=1 // pred_check_branch
      %234 = sbr.rel (0) target = $region29
    $region28: #{tpu_custom_call.1} parent=1 // pred_region
      %s236 = ssub.s32 32, 32
      %237 = vsyncadd [#allocation7], %s236
      %s239 = sshll.u32 [#allocation6], 4
      %s240 = int_to_ptr.vmem [resolvable:$true] %s239
      %242 = dma.vmem_to_hbm [thread:$0]  %s240, 32, %s5, [#allocation7]
    $region29: #{tpu_custom_call.1} parent=1 // pred_fallthru
      _
    // Predicated region
    $region30: #{tpu_custom_call.1} parent=1 // pred_check
      _
    $region31: #{tpu_custom_call.1} parent=1 // pred_check_branch
      %244 = sbr.rel (0) target = $region33
    $region32: #{tpu_custom_call.1} parent=1 // pred_region
      _
    $region33: #{tpu_custom_call.1} parent=1 // pred_fallthru
      _
    // Predicated region
    $region34: #{tpu_custom_call.1} parent=1 // pred_check
      _
    $region35: #{tpu_custom_call.1} parent=1 // pred_check_branch
      %246 = sbr.rel (0) target = $region37
    $region36: #{tpu_custom_call.1} parent=1 // pred_region
      %247 = dma.done [#allocation4], 128
    $region37: #{tpu_custom_call.1} parent=1 // pred_fallthru
      _
    // Predicated region
    $region38: #{tpu_custom_call.1} parent=1 // pred_check
      _
    $region39: #{tpu_custom_call.1} parent=1 // pred_check_branch
      %249 = sbr.rel (0) target = $region41
    $region40: #{tpu_custom_call.1} parent=1 // pred_region
      %250 = dma.done [#allocation7], 32
    $region41: #{tpu_custom_call.1} parent=1 // pred_fallthru
      _
    // Predicated region
    $region42: #{tpu_custom_call.1} parent=1 // pred_check
      _
    $region43: #{tpu_custom_call.1} parent=1 // pred_check_branch
      %252 = sbr.rel (0) target = $region45
    $region44: #{tpu_custom_call.1} parent=1 // pred_region
      _
    $region45: #{tpu_custom_call.1} parent=1 // pred_fallthru
      _
    %253 = vsyncpa [#allocation3], 1
    %254 = vsyncpa [#allocation4], 1
    %255 = vsyncpa [#allocation7], 1

</llo_original>
